<compile_context>
chip_gen: v5e
topology: v5e:2x2
jax: 0.10.0
libtpu: 0.0.40
codegen_flags: <defaults>
</compile_context>

<pallas_src>
import jax
import jax.numpy as jnp
from jax.experimental import pallas as pl
from jax.experimental.pallas import tpu as pltpu


def gru_kernel(gi_ref, h0_ref, w_cat_ref, b_hn_ref, out_ref, hN_ref, h_scr):
    """One grid step == one chunk of Tc timesteps.

    gi_ref    : (Tc, B, 3H) f32  x-projection, gates [r|z|n] lane-packed,
                                 r/z hidden biases already folded in
    h0_ref    : (B, H)           initial hidden state
    w_cat_ref : (H, 3H)          concatenated W_hh^T (single fused matmul)
    b_hn_ref  : (1, H)           n-gate hidden bias (must stay in-kernel)
    out_ref   : (B, Tc, H)       batch_first output chunk
    hN_ref    : (B, H)           final hidden state (written on last chunk)
    h_scr     : (B, H) f32 VMEM  hidden state carried across chunks
    """
    c = pl.program_id(0)

    @pl.when(c == 0)
    def _():
        h_scr[...] = h0_ref[...].astype(jnp.float32)

    tc = out_ref.shape[1]            # static chunk length
    H = hN_ref.shape[-1]             # hidden size

    # Hoist constant loads out of the recurrence: one vld per chunk.
    w_cat = w_cat_ref[...]           # (H, 3H)
    b_hn = b_hn_ref[...]             # (1, H)

    h = h_scr[...]                   # (B, H) f32, carried in registers
    hs = []
    for t in range(tc):              # static unroll; Tc is small
        gi_t = gi_ref[t]             # (B, 3H)
        # Single fused MXU dot per timestep (f32 accumulation).
        gh = jnp.dot(h, w_cat, preferred_element_type=jnp.float32)  # (B, 3H)
        # One EUP dispatch for both r and z on the packed (B, 2H) slab.
        rz = jax.nn.sigmoid(gi_t[:, :2 * H] + gh[:, :2 * H])
        r = rz[:, :H]
        z = rz[:, H:]
        n = jnp.tanh(gi_t[:, 2 * H:] + r * (gh[:, 2 * H:] + b_hn))
        h = (1.0 - z) * n + z * h
        hs.append(h)

    # One batched block store per chunk instead of Tc masked partial stores.
    out_ref[...] = jnp.stack(hs, axis=1).astype(out_ref.dtype)
    h_scr[...] = h                   # spill carry once per chunk

    @pl.when(c == pl.num_programs(0) - 1)
    def _():
        hN_ref[...] = h.astype(hN_ref.dtype)


def _pick_time_chunk(T):
    # Timesteps per grid step (statically unrolled in-kernel).  Prefer large
    # chunks to amortize the ~0.35 us per-grid-step overhead; when chunking
    # (Tc < T), Tc must be a multiple of 8 (sublane rule on the output block).
    for tc in (64, 32, 16, 8):
        if T % tc == 0:
            return tc
    return T


def gru_forward(x, h0, w_ih, w_hh, b_ih, b_hh, *, time_chunk=None):
    """x: (B, T, I) batch_first; h0: (1, B, H). Returns (out (B,T,H), h (1,B,H))."""
    B, T, I = x.shape
    H = h0.shape[-1]
    Tc = _pick_time_chunk(T) if time_chunk is None else time_chunk
    assert T % Tc == 0
    num_chunks = T // Tc

    # ---- Parallel pre-pass (XLA): input projection for all timesteps, gates
    # lane-packed [r|z|n], time-major.  Fold b_ih and the r/z hidden biases
    # here; b_hn stays in-kernel (inside r * (h@W_hn^T + b_hn)).
    bias_fold = b_ih + jnp.concatenate(
        [b_hh[:2 * H], jnp.zeros((H,), dtype=b_hh.dtype)])
    gi = (jnp.einsum('bti,gi->tbg', x, w_ih) + bias_fold).astype(jnp.float32)

    # ---- Fused recurrent weights: (H, 3H) == W_hh^T with gates on lanes.
    w_cat = jnp.transpose(w_hh).astype(jnp.float32)       # (H, 3H)
    b_hn = b_hh[2 * H:].reshape(1, H).astype(jnp.float32)  # (1, H)

    out, h_last = pl.pallas_call(
        gru_kernel,
        out_shape=(jax.ShapeDtypeStruct((B, T, H), x.dtype),
                   jax.ShapeDtypeStruct((B, H), x.dtype)),
        grid_spec=pltpu.PrefetchScalarGridSpec(
            num_scalar_prefetch=0,
            grid=(num_chunks,),
            in_specs=[
                pl.BlockSpec((Tc, B, 3 * H), lambda c: (c, 0, 0)),   # gi
                pl.BlockSpec((B, H), lambda c: (0, 0)),              # h0
                pl.BlockSpec((H, 3 * H), lambda c: (0, 0)),          # W_hh^T
                pl.BlockSpec((1, H), lambda c: (0, 0)),              # b_hn
            ],
            out_specs=[
                pl.BlockSpec((B, Tc, H), lambda c: (0, c, 0)),       # out seq
                pl.BlockSpec((B, H), lambda c: (0, 0)),              # final h
            ],
            scratch_shapes=[pltpu.VMEM((B, H), jnp.float32)],
        ),
        compiler_params=pltpu.CompilerParams(
            # Time chunks are sequential (hidden-state carry across chunks).
            dimension_semantics=("arbitrary",)),
    )(gi, h0[0], w_cat, b_hn)

    return out, h_last[None]          # (B, T, H), (1, B, H) like PyTorch


def gru_reference(x, h0, w_ih, w_hh, b_ih, b_hh):
    """Pure-JAX reference (same math as torch.nn.GRU forward)."""
    H = h0.shape[-1]

    def step(h, x_t):
        gi = x_t @ w_ih.T + b_ih
        gh = h @ w_hh.T + b_hh
        r = jax.nn.sigmoid(gi[:, :H] + gh[:, :H])
        z = jax.nn.sigmoid(gi[:, H:2 * H] + gh[:, H:2 * H])
        n = jnp.tanh(gi[:, 2 * H:] + r * gh[:, 2 * H:])
        h_new = (1.0 - z) * n + z * h
        return h_new, h_new

    x_tm = jnp.transpose(x, (1, 0, 2))
    h_last, out_tm = jax.lax.scan(step, h0[0], x_tm)
    return jnp.transpose(out_tm, (1, 0, 2)), h_last[None]


def _run_case(x, h0, w_ih, w_hh, b_ih, b_hh, time_chunk=None):
    out, hidden = jax.jit(
        lambda *a: gru_forward(*a, time_chunk=time_chunk)
    )(x, h0, w_ih, w_hh, b_ih, b_hh)
    out = jax.block_until_ready(out)
    hidden = jax.block_until_ready(hidden)
    out_ref, hidden_ref = gru_reference(x, h0, w_ih, w_hh, b_ih, b_hh)
    assert out.shape == out_ref.shape and hidden.shape == hidden_ref.shape
    assert jnp.allclose(out, out_ref, atol=1e-4, rtol=1e-4), \
        float(jnp.max(jnp.abs(out - out_ref)))
    assert jnp.allclose(hidden, hidden_ref, atol=1e-4, rtol=1e-4), \
        float(jnp.max(jnp.abs(hidden - hidden_ref)))


if __name__ == "__main__":
    input_size = 4
    hidden_size = 32
    batch = 2

    key = jax.random.PRNGKey(0)
    ks = jax.random.split(key, 8)
    bound = 1.0 / (hidden_size ** 0.5)  # matches nn.GRU reset_parameters

    w_ih = jax.random.uniform(ks[0], (3 * hidden_size, input_size),
                              jnp.float32, -bound, bound)
    w_hh = jax.random.uniform(ks[1], (3 * hidden_size, hidden_size),
                              jnp.float32, -bound, bound)
    b_ih = jax.random.uniform(ks[2], (3 * hidden_size,), jnp.float32, -bound, bound)
    b_hh = jax.random.uniform(ks[3], (3 * hidden_size,), jnp.float32, -bound, bound)

    # Case 1: T=8, single chunk (matches the EncoderRNN toy sizes).
    x1 = jax.random.normal(ks[4], (batch, 8, input_size), jnp.float32)
    h01 = jax.random.normal(ks[5], (1, batch, hidden_size), jnp.float32)
    _run_case(x1, h01, w_ih, w_hh, b_ih, b_hh)

    # Case 2: T=16 with Tc=8 — exercises the multi-chunk hidden-state carry,
    # the c==0 init, and the last-chunk final-hidden write.
    x2 = jax.random.normal(ks[6], (batch, 16, input_size), jnp.float32)
    h02 = jax.random.normal(ks[7], (1, batch, hidden_size), jnp.float32)
    _run_case(x2, h02, w_ih, w_hh, b_ih, b_hh, time_chunk=8)

    print("KERNEL_OK")
</pallas_src>

<mosaic_0001>
module attributes {stable_mosaic.version = 11 : i64} {
  func.func @gru_kernel(%arg0: i32, %arg1: memref<8x2x96xf32, #tpu.memory_space<vmem>>, %arg2: memref<2x32xf32, #tpu.memory_space<vmem>>, %arg3: memref<32x96xf32, #tpu.memory_space<vmem>>, %arg4: memref<1x32xf32, #tpu.memory_space<vmem>>, %arg5: memref<2x8x32xf32, #tpu.memory_space<vmem>>, %arg6: memref<2x32xf32, #tpu.memory_space<vmem>>, %arg7: memref<2x32xf32, #tpu.memory_space<vmem>>) attributes {dimension_semantics = [#tpu.dimension_semantics<arbitrary>], iteration_bounds = array<i64: 1>, scalar_prefetch = 0 : i64, scratch_operands = 1 : i64, tpu.core_type = #tpu.core_type<tc>, window_params = [{transform_indices = @transform_0, window_bounds = array<i64: 8, 2, 96>}, {pipeline_mode = #tpu.pipeline_mode<synchronous>, transform_indices = @transform_1, window_bounds = array<i64: 2, 32>}, {pipeline_mode = #tpu.pipeline_mode<synchronous>, transform_indices = @transform_2, window_bounds = array<i64: 32, 96>}, {pipeline_mode = #tpu.pipeline_mode<synchronous>, transform_indices = @transform_3, window_bounds = array<i64: 1, 32>}, {transform_indices = @transform_4, window_bounds = array<i64: 2, 8, 32>}, {pipeline_mode = #tpu.pipeline_mode<synchronous>, transform_indices = @transform_5, window_bounds = array<i64: 2, 32>}]} {
    %c0_i32 = arith.constant 0 : i32
    %0 = arith.cmpi eq, %arg0, %c0_i32 : i32
    %1 = arith.extui %0 : i1 to i32
    %c0_i32_0 = arith.constant 0 : i32
    %2 = arith.cmpi ne, %1, %c0_i32_0 : i32
    scf.if %2 {
      %c0_53 = arith.constant 0 : index
      %c0_54 = arith.constant 0 : index
      %220 = vector.load %arg2[%c0_53, %c0_54] : memref<2x32xf32, #tpu.memory_space<vmem>>, vector<2x32xf32>
      %c0_55 = arith.constant 0 : index
      %c0_56 = arith.constant 0 : index
      %221 = vector.load %arg7[%c0_55, %c0_56] : memref<2x32xf32, #tpu.memory_space<vmem>>, vector<2x32xf32>
      tpu.vector_store %arg7[%c0_55, %c0_56], %220 {strides = array<i32>} : memref<2x32xf32, #tpu.memory_space<vmem>>, vector<2x32xf32>,
    } else {
    }
    %c0 = arith.constant 0 : index
    %c0_1 = arith.constant 0 : index
    %3 = vector.load %arg3[%c0, %c0_1] : memref<32x96xf32, #tpu.memory_space<vmem>>, vector<32x96xf32>
    %c0_2 = arith.constant 0 : index
    %c0_3 = arith.constant 0 : index
    %4 = vector.load %arg4[%c0_2, %c0_3] : memref<1x32xf32, #tpu.memory_space<vmem>>, vector<1x32xf32>
    %c0_4 = arith.constant 0 : index
    %c0_5 = arith.constant 0 : index
    %5 = vector.load %arg7[%c0_4, %c0_5] : memref<2x32xf32, #tpu.memory_space<vmem>>, vector<2x32xf32>
    %c0_6 = arith.constant 0 : index
    %c0_7 = arith.constant 0 : index
    %c0_8 = arith.constant 0 : index
    %6 = vector.load %arg1[%c0_6, %c0_7, %c0_8] : memref<8x2x96xf32, #tpu.memory_space<vmem>>, vector<1x2x96xf32>
    %7 = vector.shape_cast %6 : vector<1x2x96xf32> to vector<2x96xf32>
    %cst = arith.constant dense<0.000000e+00> : vector<2x96xf32>
    %8 = tpu.matmul %5, %3, %cst {dimension_numbers = #tpu.dot_dimension_numbers<[1], [0], [0], [1], [0, 0, 1, 1], [], []>} : vector<2x32xf32>, vector<32x96xf32>, vector<2x96xf32> -> vector<2x96xf32>
    %9 = vector.extract_strided_slice %7 {offsets = [0, 0], sizes = [2, 64], strides = [1, 1]} : vector<2x96xf32> to vector<2x64xf32>
    %10 = vector.extract_strided_slice %8 {offsets = [0, 0], sizes = [2, 64], strides = [1, 1]} : vector<2x96xf32> to vector<2x64xf32>
    %11 = arith.addf %9, %10 : vector<2x64xf32>
    %12 = arith.negf %11 : vector<2x64xf32>
    %13 = math.exp %12 : vector<2x64xf32>
    %cst_9 = arith.constant 1.000000e+00 : f32
    %14 = vector.broadcast %cst_9 : f32 to vector<2x64xf32>
    %15 = arith.addf %14, %13 : vector<2x64xf32>
    %16 = arith.divf %14, %15 : vector<2x64xf32>
    %17 = vector.extract_strided_slice %16 {offsets = [0, 0], sizes = [2, 32], strides = [1, 1]} : vector<2x64xf32> to vector<2x32xf32>
    %18 = vector.extract_strided_slice %16 {offsets = [0, 32], sizes = [2, 32], strides = [1, 1]} : vector<2x64xf32> to vector<2x32xf32>
    %19 = vector.extract_strided_slice %7 {offsets = [0, 64], sizes = [2, 32], strides = [1, 1]} : vector<2x96xf32> to vector<2x32xf32>
    %20 = vector.extract_strided_slice %8 {offsets = [0, 64], sizes = [2, 32], strides = [1, 1]} : vector<2x96xf32> to vector<2x32xf32>
    %21 = vector.broadcast %4 : vector<1x32xf32> to vector<2x32xf32>
    %22 = arith.addf %20, %21 : vector<2x32xf32>
    %23 = arith.mulf %17, %22 : vector<2x32xf32>
    %24 = arith.addf %19, %23 : vector<2x32xf32>
    %25 = math.tanh %24 : vector<2x32xf32>
    %cst_10 = arith.constant 1.000000e+00 : f32
    %26 = vector.broadcast %cst_10 : f32 to vector<2x32xf32>
    %27 = arith.subf %26, %18 : vector<2x32xf32>
    %28 = arith.mulf %27, %25 : vector<2x32xf32>
    %29 = arith.mulf %18, %5 : vector<2x32xf32>
    %30 = arith.addf %28, %29 : vector<2x32xf32>
    %c1 = arith.constant 1 : index
    %c0_11 = arith.constant 0 : index
    %c0_12 = arith.constant 0 : index
    %31 = vector.load %arg1[%c1, %c0_11, %c0_12] : memref<8x2x96xf32, #tpu.memory_space<vmem>>, vector<1x2x96xf32>
    %32 = vector.shape_cast %31 : vector<1x2x96xf32> to vector<2x96xf32>
    %cst_13 = arith.constant dense<0.000000e+00> : vector<2x96xf32>
    %33 = tpu.matmul %30, %3, %cst_13 {dimension_numbers = #tpu.dot_dimension_numbers<[1], [0], [0], [1], [0, 0, 1, 1], [], []>} : vector<2x32xf32>, vector<32x96xf32>, vector<2x96xf32> -> vector<2x96xf32>
    %34 = vector.extract_strided_slice %32 {offsets = [0, 0], sizes = [2, 64], strides = [1, 1]} : vector<2x96xf32> to vector<2x64xf32>
    %35 = vector.extract_strided_slice %33 {offsets = [0, 0], sizes = [2, 64], strides = [1, 1]} : vector<2x96xf32> to vector<2x64xf32>
    %36 = arith.addf %34, %35 : vector<2x64xf32>
    %37 = arith.negf %36 : vector<2x64xf32>
    %38 = math.exp %37 : vector<2x64xf32>
    %cst_14 = arith.constant 1.000000e+00 : f32
    %39 = vector.broadcast %cst_14 : f32 to vector<2x64xf32>
    %40 = arith.addf %39, %38 : vector<2x64xf32>
    %41 = arith.divf %39, %40 : vector<2x64xf32>
    %42 = vector.extract_strided_slice %41 {offsets = [0, 0], sizes = [2, 32], strides = [1, 1]} : vector<2x64xf32> to vector<2x32xf32>
    %43 = vector.extract_strided_slice %41 {offsets = [0, 32], sizes = [2, 32], strides = [1, 1]} : vector<2x64xf32> to vector<2x32xf32>
    %44 = vector.extract_strided_slice %32 {offsets = [0, 64], sizes = [2, 32], strides = [1, 1]} : vector<2x96xf32> to vector<2x32xf32>
    %45 = vector.extract_strided_slice %33 {offsets = [0, 64], sizes = [2, 32], strides = [1, 1]} : vector<2x96xf32> to vector<2x32xf32>
    %46 = vector.broadcast %4 : vector<1x32xf32> to vector<2x32xf32>
    %47 = arith.addf %45, %46 : vector<2x32xf32>
    %48 = arith.mulf %42, %47 : vector<2x32xf32>
    %49 = arith.addf %44, %48 : vector<2x32xf32>
    %50 = math.tanh %49 : vector<2x32xf32>
    %cst_15 = arith.constant 1.000000e+00 : f32
    %51 = vector.broadcast %cst_15 : f32 to vector<2x32xf32>
    %52 = arith.subf %51, %43 : vector<2x32xf32>
    %53 = arith.mulf %52, %50 : vector<2x32xf32>
    %54 = arith.mulf %43, %30 : vector<2x32xf32>
    %55 = arith.addf %53, %54 : vector<2x32xf32>
    %c2 = arith.constant 2 : index
    %c0_16 = arith.constant 0 : index
    %c0_17 = arith.constant 0 : index
    %56 = vector.load %arg1[%c2, %c0_16, %c0_17] : memref<8x2x96xf32, #tpu.memory_space<vmem>>, vector<1x2x96xf32>
    %57 = vector.shape_cast %56 : vector<1x2x96xf32> to vector<2x96xf32>
    %cst_18 = arith.constant dense<0.000000e+00> : vector<2x96xf32>
    %58 = tpu.matmul %55, %3, %cst_18 {dimension_numbers = #tpu.dot_dimension_numbers<[1], [0], [0], [1], [0, 0, 1, 1], [], []>} : vector<2x32xf32>, vector<32x96xf32>, vector<2x96xf32> -> vector<2x96xf32>
    %59 = vector.extract_strided_slice %57 {offsets = [0, 0], sizes = [2, 64], strides = [1, 1]} : vector<2x96xf32> to vector<2x64xf32>
    %60 = vector.extract_strided_slice %58 {offsets = [0, 0], sizes = [2, 64], strides = [1, 1]} : vector<2x96xf32> to vector<2x64xf32>
    %61 = arith.addf %59, %60 : vector<2x64xf32>
    %62 = arith.negf %61 : vector<2x64xf32>
    %63 = math.exp %62 : vector<2x64xf32>
    %cst_19 = arith.constant 1.000000e+00 : f32
    %64 = vector.broadcast %cst_19 : f32 to vector<2x64xf32>
    %65 = arith.addf %64, %63 : vector<2x64xf32>
    %66 = arith.divf %64, %65 : vector<2x64xf32>
    %67 = vector.extract_strided_slice %66 {offsets = [0, 0], sizes = [2, 32], strides = [1, 1]} : vector<2x64xf32> to vector<2x32xf32>
    %68 = vector.extract_strided_slice %66 {offsets = [0, 32], sizes = [2, 32], strides = [1, 1]} : vector<2x64xf32> to vector<2x32xf32>
    %69 = vector.extract_strided_slice %57 {offsets = [0, 64], sizes = [2, 32], strides = [1, 1]} : vector<2x96xf32> to vector<2x32xf32>
    %70 = vector.extract_strided_slice %58 {offsets = [0, 64], sizes = [2, 32], strides = [1, 1]} : vector<2x96xf32> to vector<2x32xf32>
    %71 = vector.broadcast %4 : vector<1x32xf32> to vector<2x32xf32>
    %72 = arith.addf %70, %71 : vector<2x32xf32>
    %73 = arith.mulf %67, %72 : vector<2x32xf32>
    %74 = arith.addf %69, %73 : vector<2x32xf32>
    %75 = math.tanh %74 : vector<2x32xf32>
    %cst_20 = arith.constant 1.000000e+00 : f32
    %76 = vector.broadcast %cst_20 : f32 to vector<2x32xf32>
    %77 = arith.subf %76, %68 : vector<2x32xf32>
    %78 = arith.mulf %77, %75 : vector<2x32xf32>
    %79 = arith.mulf %68, %55 : vector<2x32xf32>
    %80 = arith.addf %78, %79 : vector<2x32xf32>
    %c3 = arith.constant 3 : index
    %c0_21 = arith.constant 0 : index
    %c0_22 = arith.constant 0 : index
    %81 = vector.load %arg1[%c3, %c0_21, %c0_22] : memref<8x2x96xf32, #tpu.memory_space<vmem>>, vector<1x2x96xf32>
    %82 = vector.shape_cast %81 : vector<1x2x96xf32> to vector<2x96xf32>
    %cst_23 = arith.constant dense<0.000000e+00> : vector<2x96xf32>
    %83 = tpu.matmul %80, %3, %cst_23 {dimension_numbers = #tpu.dot_dimension_numbers<[1], [0], [0], [1], [0, 0, 1, 1], [], []>} : vector<2x32xf32>, vector<32x96xf32>, vector<2x96xf32> -> vector<2x96xf32>
    %84 = vector.extract_strided_slice %82 {offsets = [0, 0], sizes = [2, 64], strides = [1, 1]} : vector<2x96xf32> to vector<2x64xf32>
    %85 = vector.extract_strided_slice %83 {offsets = [0, 0], sizes = [2, 64], strides = [1, 1]} : vector<2x96xf32> to vector<2x64xf32>
    %86 = arith.addf %84, %85 : vector<2x64xf32>
    %87 = arith.negf %86 : vector<2x64xf32>
    %88 = math.exp %87 : vector<2x64xf32>
    %cst_24 = arith.constant 1.000000e+00 : f32
    %89 = vector.broadcast %cst_24 : f32 to vector<2x64xf32>
    %90 = arith.addf %89, %88 : vector<2x64xf32>
    %91 = arith.divf %89, %90 : vector<2x64xf32>
    %92 = vector.extract_strided_slice %91 {offsets = [0, 0], sizes = [2, 32], strides = [1, 1]} : vector<2x64xf32> to vector<2x32xf32>
    %93 = vector.extract_strided_slice %91 {offsets = [0, 32], sizes = [2, 32], strides = [1, 1]} : vector<2x64xf32> to vector<2x32xf32>
    %94 = vector.extract_strided_slice %82 {offsets = [0, 64], sizes = [2, 32], strides = [1, 1]} : vector<2x96xf32> to vector<2x32xf32>
    %95 = vector.extract_strided_slice %83 {offsets = [0, 64], sizes = [2, 32], strides = [1, 1]} : vector<2x96xf32> to vector<2x32xf32>
    %96 = vector.broadcast %4 : vector<1x32xf32> to vector<2x32xf32>
    %97 = arith.addf %95, %96 : vector<2x32xf32>
    %98 = arith.mulf %92, %97 : vector<2x32xf32>
    %99 = arith.addf %94, %98 : vector<2x32xf32>
    %100 = math.tanh %99 : vector<2x32xf32>
    %cst_25 = arith.constant 1.000000e+00 : f32
    %101 = vector.broadcast %cst_25 : f32 to vector<2x32xf32>
    %102 = arith.subf %101, %93 : vector<2x32xf32>
    %103 = arith.mulf %102, %100 : vector<2x32xf32>
    %104 = arith.mulf %93, %80 : vector<2x32xf32>
    %105 = arith.addf %103, %104 : vector<2x32xf32>
    %c4 = arith.constant 4 : index
    %c0_26 = arith.constant 0 : index
    %c0_27 = arith.constant 0 : index
    %106 = vector.load %arg1[%c4, %c0_26, %c0_27] : memref<8x2x96xf32, #tpu.memory_space<vmem>>, vector<1x2x96xf32>
    %107 = vector.shape_cast %106 : vector<1x2x96xf32> to vector<2x96xf32>
    %cst_28 = arith.constant dense<0.000000e+00> : vector<2x96xf32>
    %108 = tpu.matmul %105, %3, %cst_28 {dimension_numbers = #tpu.dot_dimension_numbers<[1], [0], [0], [1], [0, 0, 1, 1], [], []>} : vector<2x32xf32>, vector<32x96xf32>, vector<2x96xf32> -> vector<2x96xf32>
    %109 = vector.extract_strided_slice %107 {offsets = [0, 0], sizes = [2, 64], strides = [1, 1]} : vector<2x96xf32> to vector<2x64xf32>
    %110 = vector.extract_strided_slice %108 {offsets = [0, 0], sizes = [2, 64], strides = [1, 1]} : vector<2x96xf32> to vector<2x64xf32>
    %111 = arith.addf %109, %110 : vector<2x64xf32>
    %112 = arith.negf %111 : vector<2x64xf32>
    %113 = math.exp %112 : vector<2x64xf32>
    %cst_29 = arith.constant 1.000000e+00 : f32
    %114 = vector.broadcast %cst_29 : f32 to vector<2x64xf32>
    %115 = arith.addf %114, %113 : vector<2x64xf32>
    %116 = arith.divf %114, %115 : vector<2x64xf32>
    %117 = vector.extract_strided_slice %116 {offsets = [0, 0], sizes = [2, 32], strides = [1, 1]} : vector<2x64xf32> to vector<2x32xf32>
    %118 = vector.extract_strided_slice %116 {offsets = [0, 32], sizes = [2, 32], strides = [1, 1]} : vector<2x64xf32> to vector<2x32xf32>
    %119 = vector.extract_strided_slice %107 {offsets = [0, 64], sizes = [2, 32], strides = [1, 1]} : vector<2x96xf32> to vector<2x32xf32>
    %120 = vector.extract_strided_slice %108 {offsets = [0, 64], sizes = [2, 32], strides = [1, 1]} : vector<2x96xf32> to vector<2x32xf32>
    %121 = vector.broadcast %4 : vector<1x32xf32> to vector<2x32xf32>
    %122 = arith.addf %120, %121 : vector<2x32xf32>
    %123 = arith.mulf %117, %122 : vector<2x32xf32>
    %124 = arith.addf %119, %123 : vector<2x32xf32>
    %125 = math.tanh %124 : vector<2x32xf32>
    %cst_30 = arith.constant 1.000000e+00 : f32
    %126 = vector.broadcast %cst_30 : f32 to vector<2x32xf32>
    %127 = arith.subf %126, %118 : vector<2x32xf32>
    %128 = arith.mulf %127, %125 : vector<2x32xf32>
    %129 = arith.mulf %118, %105 : vector<2x32xf32>
    %130 = arith.addf %128, %129 : vector<2x32xf32>
    %c5 = arith.constant 5 : index
    %c0_31 = arith.constant 0 : index
    %c0_32 = arith.constant 0 : index
    %131 = vector.load %arg1[%c5, %c0_31, %c0_32] : memref<8x2x96xf32, #tpu.memory_space<vmem>>, vector<1x2x96xf32>
    %132 = vector.shape_cast %131 : vector<1x2x96xf32> to vector<2x96xf32>
    %cst_33 = arith.constant dense<0.000000e+00> : vector<2x96xf32>
    %133 = tpu.matmul %130, %3, %cst_33 {dimension_numbers = #tpu.dot_dimension_numbers<[1], [0], [0], [1], [0, 0, 1, 1], [], []>} : vector<2x32xf32>, vector<32x96xf32>, vector<2x96xf32> -> vector<2x96xf32>
    %134 = vector.extract_strided_slice %132 {offsets = [0, 0], sizes = [2, 64], strides = [1, 1]} : vector<2x96xf32> to vector<2x64xf32>
    %135 = vector.extract_strided_slice %133 {offsets = [0, 0], sizes = [2, 64], strides = [1, 1]} : vector<2x96xf32> to vector<2x64xf32>
    %136 = arith.addf %134, %135 : vector<2x64xf32>
    %137 = arith.negf %136 : vector<2x64xf32>
    %138 = math.exp %137 : vector<2x64xf32>
    %cst_34 = arith.constant 1.000000e+00 : f32
    %139 = vector.broadcast %cst_34 : f32 to vector<2x64xf32>
    %140 = arith.addf %139, %138 : vector<2x64xf32>
    %141 = arith.divf %139, %140 : vector<2x64xf32>
    %142 = vector.extract_strided_slice %141 {offsets = [0, 0], sizes = [2, 32], strides = [1, 1]} : vector<2x64xf32> to vector<2x32xf32>
    %143 = vector.extract_strided_slice %141 {offsets = [0, 32], sizes = [2, 32], strides = [1, 1]} : vector<2x64xf32> to vector<2x32xf32>
    %144 = vector.extract_strided_slice %132 {offsets = [0, 64], sizes = [2, 32], strides = [1, 1]} : vector<2x96xf32> to vector<2x32xf32>
    %145 = vector.extract_strided_slice %133 {offsets = [0, 64], sizes = [2, 32], strides = [1, 1]} : vector<2x96xf32> to vector<2x32xf32>
    %146 = vector.broadcast %4 : vector<1x32xf32> to vector<2x32xf32>
    %147 = arith.addf %145, %146 : vector<2x32xf32>
    %148 = arith.mulf %142, %147 : vector<2x32xf32>
    %149 = arith.addf %144, %148 : vector<2x32xf32>
    %150 = math.tanh %149 : vector<2x32xf32>
    %cst_35 = arith.constant 1.000000e+00 : f32
    %151 = vector.broadcast %cst_35 : f32 to vector<2x32xf32>
    %152 = arith.subf %151, %143 : vector<2x32xf32>
    %153 = arith.mulf %152, %150 : vector<2x32xf32>
    %154 = arith.mulf %143, %130 : vector<2x32xf32>
    %155 = arith.addf %153, %154 : vector<2x32xf32>
    %c6 = arith.constant 6 : index
    %c0_36 = arith.constant 0 : index
    %c0_37 = arith.constant 0 : index
    %156 = vector.load %arg1[%c6, %c0_36, %c0_37] : memref<8x2x96xf32, #tpu.memory_space<vmem>>, vector<1x2x96xf32>
    %157 = vector.shape_cast %156 : vector<1x2x96xf32> to vector<2x96xf32>
    %cst_38 = arith.constant dense<0.000000e+00> : vector<2x96xf32>
    %158 = tpu.matmul %155, %3, %cst_38 {dimension_numbers = #tpu.dot_dimension_numbers<[1], [0], [0], [1], [0, 0, 1, 1], [], []>} : vector<2x32xf32>, vector<32x96xf32>, vector<2x96xf32> -> vector<2x96xf32>
    %159 = vector.extract_strided_slice %157 {offsets = [0, 0], sizes = [2, 64], strides = [1, 1]} : vector<2x96xf32> to vector<2x64xf32>
    %160 = vector.extract_strided_slice %158 {offsets = [0, 0], sizes = [2, 64], strides = [1, 1]} : vector<2x96xf32> to vector<2x64xf32>
    %161 = arith.addf %159, %160 : vector<2x64xf32>
    %162 = arith.negf %161 : vector<2x64xf32>
    %163 = math.exp %162 : vector<2x64xf32>
    %cst_39 = arith.constant 1.000000e+00 : f32
    %164 = vector.broadcast %cst_39 : f32 to vector<2x64xf32>
    %165 = arith.addf %164, %163 : vector<2x64xf32>
    %166 = arith.divf %164, %165 : vector<2x64xf32>
    %167 = vector.extract_strided_slice %166 {offsets = [0, 0], sizes = [2, 32], strides = [1, 1]} : vector<2x64xf32> to vector<2x32xf32>
    %168 = vector.extract_strided_slice %166 {offsets = [0, 32], sizes = [2, 32], strides = [1, 1]} : vector<2x64xf32> to vector<2x32xf32>
    %169 = vector.extract_strided_slice %157 {offsets = [0, 64], sizes = [2, 32], strides = [1, 1]} : vector<2x96xf32> to vector<2x32xf32>
    %170 = vector.extract_strided_slice %158 {offsets = [0, 64], sizes = [2, 32], strides = [1, 1]} : vector<2x96xf32> to vector<2x32xf32>
    %171 = vector.broadcast %4 : vector<1x32xf32> to vector<2x32xf32>
    %172 = arith.addf %170, %171 : vector<2x32xf32>
    %173 = arith.mulf %167, %172 : vector<2x32xf32>
    %174 = arith.addf %169, %173 : vector<2x32xf32>
    %175 = math.tanh %174 : vector<2x32xf32>
    %cst_40 = arith.constant 1.000000e+00 : f32
    %176 = vector.broadcast %cst_40 : f32 to vector<2x32xf32>
    %177 = arith.subf %176, %168 : vector<2x32xf32>
    %178 = arith.mulf %177, %175 : vector<2x32xf32>
    %179 = arith.mulf %168, %155 : vector<2x32xf32>
    %180 = arith.addf %178, %179 : vector<2x32xf32>
    %c7 = arith.constant 7 : index
    %c0_41 = arith.constant 0 : index
    %c0_42 = arith.constant 0 : index
    %181 = vector.load %arg1[%c7, %c0_41, %c0_42] : memref<8x2x96xf32, #tpu.memory_space<vmem>>, vector<1x2x96xf32>
    %182 = vector.shape_cast %181 : vector<1x2x96xf32> to vector<2x96xf32>
    %cst_43 = arith.constant dense<0.000000e+00> : vector<2x96xf32>
    %183 = tpu.matmul %180, %3, %cst_43 {dimension_numbers = #tpu.dot_dimension_numbers<[1], [0], [0], [1], [0, 0, 1, 1], [], []>} : vector<2x32xf32>, vector<32x96xf32>, vector<2x96xf32> -> vector<2x96xf32>
    %184 = vector.extract_strided_slice %182 {offsets = [0, 0], sizes = [2, 64], strides = [1, 1]} : vector<2x96xf32> to vector<2x64xf32>
    %185 = vector.extract_strided_slice %183 {offsets = [0, 0], sizes = [2, 64], strides = [1, 1]} : vector<2x96xf32> to vector<2x64xf32>
    %186 = arith.addf %184, %185 : vector<2x64xf32>
    %187 = arith.negf %186 : vector<2x64xf32>
    %188 = math.exp %187 : vector<2x64xf32>
    %cst_44 = arith.constant 1.000000e+00 : f32
    %189 = vector.broadcast %cst_44 : f32 to vector<2x64xf32>
    %190 = arith.addf %189, %188 : vector<2x64xf32>
    %191 = arith.divf %189, %190 : vector<2x64xf32>
    %192 = vector.extract_strided_slice %191 {offsets = [0, 0], sizes = [2, 32], strides = [1, 1]} : vector<2x64xf32> to vector<2x32xf32>
    %193 = vector.extract_strided_slice %191 {offsets = [0, 32], sizes = [2, 32], strides = [1, 1]} : vector<2x64xf32> to vector<2x32xf32>
    %194 = vector.extract_strided_slice %182 {offsets = [0, 64], sizes = [2, 32], strides = [1, 1]} : vector<2x96xf32> to vector<2x32xf32>
    %195 = vector.extract_strided_slice %183 {offsets = [0, 64], sizes = [2, 32], strides = [1, 1]} : vector<2x96xf32> to vector<2x32xf32>
    %196 = vector.broadcast %4 : vector<1x32xf32> to vector<2x32xf32>
    %197 = arith.addf %195, %196 : vector<2x32xf32>
    %198 = arith.mulf %192, %197 : vector<2x32xf32>
    %199 = arith.addf %194, %198 : vector<2x32xf32>
    %200 = math.tanh %199 : vector<2x32xf32>
    %cst_45 = arith.constant 1.000000e+00 : f32
    %201 = vector.broadcast %cst_45 : f32 to vector<2x32xf32>
    %202 = arith.subf %201, %193 : vector<2x32xf32>
    %203 = arith.mulf %202, %200 : vector<2x32xf32>
    %204 = arith.mulf %193, %180 : vector<2x32xf32>
    %205 = arith.addf %203, %204 : vector<2x32xf32>
    %206 = vector.shape_cast %30 : vector<2x32xf32> to vector<2x1x32xf32>
    %207 = vector.shape_cast %55 : vector<2x32xf32> to vector<2x1x32xf32>
    %208 = vector.shape_cast %80 : vector<2x32xf32> to vector<2x1x32xf32>
    %209 = vector.shape_cast %105 : vector<2x32xf32> to vector<2x1x32xf32>
    %210 = vector.shape_cast %130 : vector<2x32xf32> to vector<2x1x32xf32>
    %211 = vector.shape_cast %155 : vector<2x32xf32> to vector<2x1x32xf32>
    %212 = vector.shape_cast %180 : vector<2x32xf32> to vector<2x1x32xf32>
    %213 = vector.shape_cast %205 : vector<2x32xf32> to vector<2x1x32xf32>
    %214 = tpu.concatenate %206, %207, %208, %209, %210, %211, %212, %213 in 1 : vector<2x1x32xf32>, vector<2x1x32xf32>, vector<2x1x32xf32>, vector<2x1x32xf32>, vector<2x1x32xf32>, vector<2x1x32xf32>, vector<2x1x32xf32>, vector<2x1x32xf32> -> vector<2x8x32xf32>
    %c0_46 = arith.constant 0 : index
    %c0_47 = arith.constant 0 : index
    %c0_48 = arith.constant 0 : index
    %215 = vector.load %arg5[%c0_46, %c0_47, %c0_48] : memref<2x8x32xf32, #tpu.memory_space<vmem>>, vector<2x8x32xf32>
    tpu.vector_store %arg5[%c0_46, %c0_47, %c0_48], %214 {strides = array<i32>} : memref<2x8x32xf32, #tpu.memory_space<vmem>>, vector<2x8x32xf32>,
    %c0_49 = arith.constant 0 : index
    %c0_50 = arith.constant 0 : index
    %216 = vector.load %arg7[%c0_49, %c0_50] : memref<2x32xf32, #tpu.memory_space<vmem>>, vector<2x32xf32>
    tpu.vector_store %arg7[%c0_49, %c0_50], %205 {strides = array<i32>} : memref<2x32xf32, #tpu.memory_space<vmem>>, vector<2x32xf32>,
    %c0_i32_51 = arith.constant 0 : i32
    %217 = arith.cmpi eq, %arg0, %c0_i32_51 : i32
    %218 = arith.extui %217 : i1 to i32
    %c0_i32_52 = arith.constant 0 : i32
    %219 = arith.cmpi ne, %218, %c0_i32_52 : i32
    scf.if %219 {
      %c0_53 = arith.constant 0 : index
      %c0_54 = arith.constant 0 : index
      %220 = vector.load %arg6[%c0_53, %c0_54] : memref<2x32xf32, #tpu.memory_space<vmem>>, vector<2x32xf32>
      tpu.vector_store %arg6[%c0_53, %c0_54], %205 {strides = array<i32>} : memref<2x32xf32, #tpu.memory_space<vmem>>, vector<2x32xf32>,
    } else {
    }
    return
  }
  func.func @transform_0(%arg0: i32) -> (i32, i32, i32) {
    %c0_i32 = arith.constant 0 : i32
    %c0_i32_0 = arith.constant 0 : i32
    %c0_i32_1 = arith.constant 0 : i32
    return %arg0, %c0_i32, %c0_i32_0 : i32, i32, i32
  }
  func.func @transform_1(%arg0: i32) -> (i32, i32) {
    %c0_i32 = arith.constant 0 : i32
    %c0_i32_0 = arith.constant 0 : i32
    %c0_i32_1 = arith.constant 0 : i32
    return %c0_i32, %c0_i32_0 : i32, i32
  }
  func.func @transform_2(%arg0: i32) -> (i32, i32) {
    %c0_i32 = arith.constant 0 : i32
    %c0_i32_0 = arith.constant 0 : i32
    %c0_i32_1 = arith.constant 0 : i32
    return %c0_i32, %c0_i32_0 : i32, i32
  }
  func.func @transform_3(%arg0: i32) -> (i32, i32) {
    %c0_i32 = arith.constant 0 : i32
    %c0_i32_0 = arith.constant 0 : i32
    %c0_i32_1 = arith.constant 0 : i32
    return %c0_i32, %c0_i32_0 : i32, i32
  }
  func.func @transform_4(%arg0: i32) -> (i32, i32, i32) {
    %c0_i32 = arith.constant 0 : i32
    %c0_i32_0 = arith.constant 0 : i32
    %c0_i32_1 = arith.constant 0 : i32
    return %c0_i32, %arg0, %c0_i32_0 : i32, i32, i32
  }
  func.func @transform_5(%arg0: i32) -> (i32, i32) {
    %c0_i32 = arith.constant 0 : i32
    %c0_i32_0 = arith.constant 0 : i32
    %c0_i32_1 = arith.constant 0 : i32
    return %c0_i32, %c0_i32_0 : i32, i32
  }
}

</mosaic_0001>

<llo_original>
// kernel: _lambda_.1
$region0: #{_lambda_.1}
  #allocation0 [shape = 'u32[]', space=smem, size = 0x4, offset = 0x4, fixed_abs, tag = 'smem constant byte address 0x4 - core index']
  #allocation1 [shape = 'u32[72,128]{1,0:T(1,128)}', space=vmem, size = 0x9000, scoped, tag = 'internal scratch']
  #allocation2 [shape = 'f32[2,32]{1,0:T(2,128)}', space=vmem, size = 0x400, scoped, tag = 'scratch operand']
  %s0 = inlined_call_operand.vmem [shape: f32[8,2,96], index: 0, kind: input, shape index: {}]
  %s1 = inlined_call_operand.vmem [shape: f32[2,32], index: 1, kind: input, shape index: {}]
  %s2 = inlined_call_operand.vmem [shape: f32[32,96], index: 2, kind: input, shape index: {}]
  %s3 = inlined_call_operand.vmem [shape: f32[1,32], index: 3, kind: input, shape index: {}]
  %s4 = inlined_call_operand.hbm [shape: f32[2,8,32], index: 4, kind: output, shape index: {0}]
  %s5 = inlined_call_operand.hbm [shape: f32[2,32], index: 5, kind: output, shape index: {1}]
  %6 = xla_tuple %s4, %s5
  %s7 = sld [smem:[#allocation0]]
  $region42: #{_lambda_.1} parent=0
    _
  %s9 = ssub.s32 1, %s7
  %s10 = scalar_select 0, %s9, %s7
  $region1: #{_lambda_.1} parent=0
    #allocation3 [shape = 'u8[8192]{0}', space=vmem, size = 0x2000, scoped, tag = 'output window, operand 0, single buffered']
    #allocation4 [shape = 's32[1]{0}', space=sflag, size = 0x4, scoped, tag = 'scoped memory for _lambda_.1']
    #allocation5 [shape = 'u8[1024]{0}', space=vmem, size = 0x400, scoped, tag = 'output window, operand 1, single buffered']
    #allocation6 [shape = 's32[1]{0}', space=sflag, size = 0x4, scoped, tag = 'scoped memory for _lambda_.1']
    %11 = vsyncpa [#allocation4], 0
    %12 = vsyncpa [#allocation6], 0
    // Predicated region
    $region2: #{_lambda_.1} parent=1 // pred_check
      _
    $region3: #{_lambda_.1} parent=1 // pred_check_branch
      %14 = sbr.rel (0) target = $region5
    $region4: #{_lambda_.1} parent=1 // pred_region
      _
    $region5: #{_lambda_.1} parent=1 // pred_fallthru
      _
    // Predicated region
    $region6: #{_lambda_.1} parent=1 // pred_check
      _
    $region7: #{_lambda_.1} parent=1 // pred_check_branch
      %16 = sbr.rel (0) target = $region9
    $region8: #{_lambda_.1} parent=1 // pred_region
      _
    $region9: #{_lambda_.1} parent=1 // pred_fallthru
      _
    // Predicated region
    $region10: #{_lambda_.1} parent=1 // pred_check
      _
    $region11: #{_lambda_.1} parent=1 // pred_check_branch
      %18 = sbr.rel (0) target = $region13
    $region12: #{_lambda_.1} parent=1 // pred_region
      _
    $region13: #{_lambda_.1} parent=1 // pred_fallthru
      _
    // Predicated region
    $region14: #{_lambda_.1} parent=1 // pred_check
      _
    $region15: #{_lambda_.1} parent=1 // pred_check_branch
      %20 = sbr.rel (0) target = $region17
    $region16: #{_lambda_.1} parent=1 // pred_region
      _
    $region17: #{_lambda_.1} parent=1 // pred_fallthru
      _
    %p21 = scmp.eq.s32.totalorder 0, 0
    // Predicated region
    $region18: #{_lambda_.1} parent=1 // pred_check
      %p22 = pneg %p21
    $region19: #{_lambda_.1} parent=1 // pred_check_branch
      %24 = sbr.rel (%p22) target = $region21
    $region20: #{_lambda_.1} parent=1 // pred_region
      %v25 = vld [vmem:[%s1] sm:$0x3]
      %vm26 = vcmask 254976
      %27 = vst.msk [vmem:[#allocation2] sm:$0x3] %vm26, %v25
    $region21: #{_lambda_.1} parent=1 // pred_fallthru
      _
    %v28 = vld [vmem:[%s2] sm:$0xff]
    %v29 = vld [vmem:[%s2 + $0x8] sm:$0xff]
    %v30 = vld [vmem:[%s2 + $0x10] sm:$0xff]
    %v31 = vld [vmem:[%s2 + $0x18] sm:$0xff]
    %v32 = vld [vmem:[%s3] sm:$0x1]
    %v33 = vld [vmem:[#allocation2] sm:$0x3]
    %v34 = vld [vmem:[%s0] sm:$0x3]
    %vm35 = vcmask 261120
    %v37 = vsel %vm35, %v33, 0
    %39 = vmatpush.msra.mxu0 0.0
    %40 = vmatpush.msra.mxu0 0.0
    %41 = vmatpush.msra.mxu0 0.0
    %42 = vmatpush.msra.mxu0 0.0
    %43 = vmatpush.msra.mxu0 0.0
    %44 = vmatpush.msra.mxu0 0.0
    %45 = vmatpush.msra.mxu0 0.0
    %46 = vmatpush.msra.mxu0 0.0
    %47 = vmatpush.msra.mxu0 0.0
    %48 = vmatpush.msra.mxu0 0.0
    %49 = vmatpush.msra.mxu0 0.0
    %50 = vmatpush.msra.mxu0 0.0
    %51 = vmatpush.msra.mxu0 %v31
    %52 = vmatpush.msra.mxu0 %v30
    %53 = vmatpush.msra.mxu0 %v29
    %54 = vmatpush.msra.mxu0 %v28
    %55 = vmatmul.f32.gmra.mxu0 %v37
    %v56 = vpop.f32.mrf.mxu0
    %v57 = vadd.f32 0.0, %v56
    %58 = vdwg.mxu0
    %v59 = vadd.f32 %v34, %v57
    %v60 = vxor.u32 %v59, 2147483648
    %v61 = vmul.f32 %v60, 1.442695
    %v62 = vpow.pop %v61
    %v63 = vadd.f32 %v62, 1.0
    %v64 = vrcp.pop %v63
    %v65 = vmul.f32 %v63, %v64
    %v66 = vsub.f32 1.0, %v65
    %v67 = vmul.f32 %v64, %v66
    %v68 = vadd.f32 %v64, %v67
    %vm69 = vweird.f32 %v63
    %vm70 = vweird.f32 %v64
    %vm71 = vmor %vm69, %vm70
    %v72 = vsel %vm71, %v64, %v68
    %v73 = vand.u32 2147483647, %v63
    %vm74 = vcmp.eq.f32.partialorder %v73, 8.507059e+37
    %v75 = vand.u32 %v63, 2147483648
    %v76 = vor.u32 1.1754944e-38, %v75
    %v77 = vsel %vm74, %v76, %v72
    %v78 = vmul.f32 1.0, %v77
    %v80 = vperm.slane %v32, 0
    %81 = vrot.lane.b32.xlu0 %v80, 64
    %v82 = vpop.permute.xlu0 %81
    %v84 = vadd.f32 %v57, %v82
    %86 = vrot.lane.b32.xlu0 %v84, 64
    %v87 = vpop.permute.xlu0 %86
    %v89 = vmul.f32 %v78, %v87
    %91 = vrot.lane.b32.xlu0 %v89, 64
    %v92 = vpop.permute.xlu0 %91
    %v94 = vadd.f32 %v34, %v92
    %v95 = vtanh.pop %v94
    %v96 = vsub.f32 1.0, %v78
    %98 = vrot.lane.b32.xlu0 %v95, 96
    %v99 = vpop.permute.xlu0 %98
    %v101 = vmul.f32 %v96, %v99
    %102 = vrot.lane.b32.xlu0 %v33, 32
    %v103 = vpop.permute.xlu0 %102
    %v105 = vmul.f32 %v78, %v103
    %v106 = vadd.f32 %v101, %v105
    %s107 = scalar_lea.vmem %s0, 2
    %v108 = vld [vmem:[%s107] sm:$0x3]
    %110 = vrot.lane.b32.xlu0 %v106, 96
    %v111 = vpop.permute.xlu0 %110
    %v112 = vsel %vm35, %v111, 0
    %114 = vmatpush.msra.mxu0 0.0
    %115 = vmatpush.msra.mxu0 0.0
    %116 = vmatpush.msra.mxu0 0.0
    %117 = vmatpush.msra.mxu0 0.0
    %118 = vmatpush.msra.mxu0 0.0
    %119 = vmatpush.msra.mxu0 0.0
    %120 = vmatpush.msra.mxu0 0.0
    %121 = vmatpush.msra.mxu0 0.0
    %122 = vmatpush.msra.mxu0 0.0
    %123 = vmatpush.msra.mxu0 0.0
    %124 = vmatpush.msra.mxu0 0.0
    %125 = vmatpush.msra.mxu0 0.0
    %126 = vmatpush.msra.mxu0 %v31
    %127 = vmatpush.msra.mxu0 %v30
    %128 = vmatpush.msra.mxu0 %v29
    %129 = vmatpush.msra.mxu0 %v28
    %130 = vmatmul.f32.gmra.mxu0 %v112
    %v131 = vpop.f32.mrf.mxu0
    %v132 = vadd.f32 0.0, %v131
    %133 = vdwg.mxu0
    %v134 = vadd.f32 %v108, %v132
    %v135 = vxor.u32 %v134, 2147483648
    %v136 = vmul.f32 %v135, 1.442695
    %v137 = vpow.pop %v136
    %v138 = vadd.f32 %v137, 1.0
    %v139 = vrcp.pop %v138
    %v140 = vmul.f32 %v138, %v139
    %v141 = vsub.f32 1.0, %v140
    %v142 = vmul.f32 %v139, %v141
    %v143 = vadd.f32 %v139, %v142
    %vm144 = vweird.f32 %v138
    %vm145 = vweird.f32 %v139
    %vm146 = vmor %vm144, %vm145
    %v147 = vsel %vm146, %v139, %v143
    %v148 = vand.u32 2147483647, %v138
    %vm149 = vcmp.eq.f32.partialorder %v148, 8.507059e+37
    %v150 = vand.u32 %v138, 2147483648
    %v151 = vor.u32 1.1754944e-38, %v150
    %v152 = vsel %vm149, %v151, %v147
    %v153 = vmul.f32 1.0, %v152
    %v154 = vadd.f32 %v132, %v82
    %156 = vrot.lane.b32.xlu0 %v154, 64
    %v157 = vpop.permute.xlu0 %156
    %v159 = vmul.f32 %v153, %v157
    %161 = vrot.lane.b32.xlu0 %v159, 64
    %v162 = vpop.permute.xlu0 %161
    %v164 = vadd.f32 %v108, %v162
    %v165 = vtanh.pop %v164
    %v166 = vsub.f32 1.0, %v153
    %168 = vrot.lane.b32.xlu0 %v165, 96
    %v169 = vpop.permute.xlu0 %168
    %v171 = vmul.f32 %v166, %v169
    %v172 = vmul.f32 %v153, %v106
    %v173 = vadd.f32 %v171, %v172
    %s174 = scalar_lea.vmem %s0, 4
    %v175 = vld [vmem:[%s174] sm:$0x3]
    %177 = vrot.lane.b32.xlu0 %v173, 96
    %v178 = vpop.permute.xlu0 %177
    %v179 = vsel %vm35, %v178, 0
    %181 = vmatpush.msra.mxu0 0.0
    %182 = vmatpush.msra.mxu0 0.0
    %183 = vmatpush.msra.mxu0 0.0
    %184 = vmatpush.msra.mxu0 0.0
    %185 = vmatpush.msra.mxu0 0.0
    %186 = vmatpush.msra.mxu0 0.0
    %187 = vmatpush.msra.mxu0 0.0
    %188 = vmatpush.msra.mxu0 0.0
    %189 = vmatpush.msra.mxu0 0.0
    %190 = vmatpush.msra.mxu0 0.0
    %191 = vmatpush.msra.mxu0 0.0
    %192 = vmatpush.msra.mxu0 0.0
    %193 = vmatpush.msra.mxu0 %v31
    %194 = vmatpush.msra.mxu0 %v30
    %195 = vmatpush.msra.mxu0 %v29
    %196 = vmatpush.msra.mxu0 %v28
    %197 = vmatmul.f32.gmra.mxu0 %v179
    %v198 = vpop.f32.mrf.mxu0
    %v199 = vadd.f32 0.0, %v198
    %200 = vdwg.mxu0
    %v201 = vadd.f32 %v175, %v199
    %v202 = vxor.u32 %v201, 2147483648
    %v203 = vmul.f32 %v202, 1.442695
    %v204 = vpow.pop %v203
    %v205 = vadd.f32 %v204, 1.0
    %v206 = vrcp.pop %v205
    %v207 = vmul.f32 %v205, %v206
    %v208 = vsub.f32 1.0, %v207
    %v209 = vmul.f32 %v206, %v208
    %v210 = vadd.f32 %v206, %v209
    %vm211 = vweird.f32 %v205
    %vm212 = vweird.f32 %v206
    %vm213 = vmor %vm211, %vm212
    %v214 = vsel %vm213, %v206, %v210
    %v215 = vand.u32 2147483647, %v205
    %vm216 = vcmp.eq.f32.partialorder %v215, 8.507059e+37
    %v217 = vand.u32 %v205, 2147483648
    %v218 = vor.u32 1.1754944e-38, %v217
    %v219 = vsel %vm216, %v218, %v214
    %v220 = vmul.f32 1.0, %v219
    %v221 = vadd.f32 %v199, %v82
    %223 = vrot.lane.b32.xlu0 %v221, 64
    %v224 = vpop.permute.xlu0 %223
    %v226 = vmul.f32 %v220, %v224
    %228 = vrot.lane.b32.xlu0 %v226, 64
    %v229 = vpop.permute.xlu0 %228
    %v231 = vadd.f32 %v175, %v229
    %v232 = vtanh.pop %v231
    %v233 = vsub.f32 1.0, %v220
    %235 = vrot.lane.b32.xlu0 %v232, 96
    %v236 = vpop.permute.xlu0 %235
    %v238 = vmul.f32 %v233, %v236
    %v239 = vmul.f32 %v220, %v173
    %v240 = vadd.f32 %v238, %v239
    %s241 = scalar_lea.vmem %s0, 6
    %v242 = vld [vmem:[%s241] sm:$0x3]
    %244 = vrot.lane.b32.xlu0 %v240, 96
    %v245 = vpop.permute.xlu0 %244
    %v246 = vsel %vm35, %v245, 0
    %248 = vmatpush.msra.mxu0 0.0
    %249 = vmatpush.msra.mxu0 0.0
    %250 = vmatpush.msra.mxu0 0.0
    %251 = vmatpush.msra.mxu0 0.0
    %252 = vmatpush.msra.mxu0 0.0
    %253 = vmatpush.msra.mxu0 0.0
    %254 = vmatpush.msra.mxu0 0.0
    %255 = vmatpush.msra.mxu0 0.0
    %256 = vmatpush.msra.mxu0 0.0
    %257 = vmatpush.msra.mxu0 0.0
    %258 = vmatpush.msra.mxu0 0.0
    %259 = vmatpush.msra.mxu0 0.0
    %260 = vmatpush.msra.mxu0 %v31
    %261 = vmatpush.msra.mxu0 %v30
    %262 = vmatpush.msra.mxu0 %v29
    %263 = vmatpush.msra.mxu0 %v28
    %264 = vmatmul.f32.gmra.mxu0 %v246
    %v265 = vpop.f32.mrf.mxu0
    %v266 = vadd.f32 0.0, %v265
    %267 = vdwg.mxu0
    %v268 = vadd.f32 %v242, %v266
    %v269 = vxor.u32 %v268, 2147483648
    %v270 = vmul.f32 %v269, 1.442695
    %v271 = vpow.pop %v270
    %v272 = vadd.f32 %v271, 1.0
    %v273 = vrcp.pop %v272
    %v274 = vmul.f32 %v272, %v273
    %v275 = vsub.f32 1.0, %v274
    %v276 = vmul.f32 %v273, %v275
    %v277 = vadd.f32 %v273, %v276
    %vm278 = vweird.f32 %v272
    %vm279 = vweird.f32 %v273
    %vm280 = vmor %vm278, %vm279
    %v281 = vsel %vm280, %v273, %v277
    %v282 = vand.u32 2147483647, %v272
    %vm283 = vcmp.eq.f32.partialorder %v282, 8.507059e+37
    %v284 = vand.u32 %v272, 2147483648
    %v285 = vor.u32 1.1754944e-38, %v284
    %v286 = vsel %vm283, %v285, %v281
    %v287 = vmul.f32 1.0, %v286
    %v288 = vadd.f32 %v266, %v82
    %290 = vrot.lane.b32.xlu0 %v288, 64
    %v291 = vpop.permute.xlu0 %290
    %v293 = vmul.f32 %v287, %v291
    %295 = vrot.lane.b32.xlu0 %v293, 64
    %v296 = vpop.permute.xlu0 %295
    %v298 = vadd.f32 %v242, %v296
    %v299 = vtanh.pop %v298
    %v300 = vsub.f32 1.0, %v287
    %302 = vrot.lane.b32.xlu0 %v299, 96
    %v303 = vpop.permute.xlu0 %302
    %v305 = vmul.f32 %v300, %v303
    %v306 = vmul.f32 %v287, %v240
    %v307 = vadd.f32 %v305, %v306
    %s308 = scalar_lea.vmem %s0, 8
    %v309 = vld [vmem:[%s308] sm:$0x3]
    %311 = vrot.lane.b32.xlu0 %v307, 96
    %v312 = vpop.permute.xlu0 %311
    %v313 = vsel %vm35, %v312, 0
    %315 = vmatpush.msra.mxu0 0.0
    %316 = vmatpush.msra.mxu0 0.0
    %317 = vmatpush.msra.mxu0 0.0
    %318 = vmatpush.msra.mxu0 0.0
    %319 = vmatpush.msra.mxu0 0.0
    %320 = vmatpush.msra.mxu0 0.0
    %321 = vmatpush.msra.mxu0 0.0
    %322 = vmatpush.msra.mxu0 0.0
    %323 = vmatpush.msra.mxu0 0.0
    %324 = vmatpush.msra.mxu0 0.0
    %325 = vmatpush.msra.mxu0 0.0
    %326 = vmatpush.msra.mxu0 0.0
    %327 = vmatpush.msra.mxu0 %v31
    %328 = vmatpush.msra.mxu0 %v30
    %329 = vmatpush.msra.mxu0 %v29
    %330 = vmatpush.msra.mxu0 %v28
    %331 = vmatmul.f32.gmra.mxu0 %v313
    %v332 = vpop.f32.mrf.mxu0
    %v333 = vadd.f32 0.0, %v332
    %334 = vdwg.mxu0
    %v335 = vadd.f32 %v309, %v333
    %v336 = vxor.u32 %v335, 2147483648
    %v337 = vmul.f32 %v336, 1.442695
    %v338 = vpow.pop %v337
    %v339 = vadd.f32 %v338, 1.0
    %v340 = vrcp.pop %v339
    %v341 = vmul.f32 %v339, %v340
    %v342 = vsub.f32 1.0, %v341
    %v343 = vmul.f32 %v340, %v342
    %v344 = vadd.f32 %v340, %v343
    %vm345 = vweird.f32 %v339
    %vm346 = vweird.f32 %v340
    %vm347 = vmor %vm345, %vm346
    %v348 = vsel %vm347, %v340, %v344
    %v349 = vand.u32 2147483647, %v339
    %vm350 = vcmp.eq.f32.partialorder %v349, 8.507059e+37
    %v351 = vand.u32 %v339, 2147483648
    %v352 = vor.u32 1.1754944e-38, %v351
    %v353 = vsel %vm350, %v352, %v348
    %v354 = vmul.f32 1.0, %v353
    %v355 = vadd.f32 %v333, %v82
    %357 = vrot.lane.b32.xlu0 %v355, 64
    %v358 = vpop.permute.xlu0 %357
    %v360 = vmul.f32 %v354, %v358
    %362 = vrot.lane.b32.xlu0 %v360, 64
    %v363 = vpop.permute.xlu0 %362
    %v365 = vadd.f32 %v309, %v363
    %v366 = vtanh.pop %v365
    %v367 = vsub.f32 1.0, %v354
    %369 = vrot.lane.b32.xlu0 %v366, 96
    %v370 = vpop.permute.xlu0 %369
    %v372 = vmul.f32 %v367, %v370
    %v373 = vmul.f32 %v354, %v307
    %v374 = vadd.f32 %v372, %v373
    %s375 = scalar_lea.vmem %s0, 10
    %v376 = vld [vmem:[%s375] sm:$0x3]
    %378 = vrot.lane.b32.xlu0 %v374, 96
    %v379 = vpop.permute.xlu0 %378
    %v380 = vsel %vm35, %v379, 0
    %382 = vmatpush.msra.mxu0 0.0
    %383 = vmatpush.msra.mxu0 0.0
    %384 = vmatpush.msra.mxu0 0.0
    %385 = vmatpush.msra.mxu0 0.0
    %386 = vmatpush.msra.mxu0 0.0
    %387 = vmatpush.msra.mxu0 0.0
    %388 = vmatpush.msra.mxu0 0.0
    %389 = vmatpush.msra.mxu0 0.0
    %390 = vmatpush.msra.mxu0 0.0
    %391 = vmatpush.msra.mxu0 0.0
    %392 = vmatpush.msra.mxu0 0.0
    %393 = vmatpush.msra.mxu0 0.0
    %394 = vmatpush.msra.mxu0 %v31
    %395 = vmatpush.msra.mxu0 %v30
    %396 = vmatpush.msra.mxu0 %v29
    %397 = vmatpush.msra.mxu0 %v28
    %398 = vmatmul.f32.gmra.mxu0 %v380
    %v399 = vpop.f32.mrf.mxu0
    %v400 = vadd.f32 0.0, %v399
    %401 = vdwg.mxu0
    %v402 = vadd.f32 %v376, %v400
    %v403 = vxor.u32 %v402, 2147483648
    %v404 = vmul.f32 %v403, 1.442695
    %v405 = vpow.pop %v404
    %v406 = vadd.f32 %v405, 1.0
    %v407 = vrcp.pop %v406
    %v408 = vmul.f32 %v406, %v407
    %v409 = vsub.f32 1.0, %v408
    %v410 = vmul.f32 %v407, %v409
    %v411 = vadd.f32 %v407, %v410
    %vm412 = vweird.f32 %v406
    %vm413 = vweird.f32 %v407
    %vm414 = vmor %vm412, %vm413
    %v415 = vsel %vm414, %v407, %v411
    %v416 = vand.u32 2147483647, %v406
    %vm417 = vcmp.eq.f32.partialorder %v416, 8.507059e+37
    %v418 = vand.u32 %v406, 2147483648
    %v419 = vor.u32 1.1754944e-38, %v418
    %v420 = vsel %vm417, %v419, %v415
    %v421 = vmul.f32 1.0, %v420
    %v422 = vadd.f32 %v400, %v82
    %424 = vrot.lane.b32.xlu0 %v422, 64
    %v425 = vpop.permute.xlu0 %424
    %v427 = vmul.f32 %v421, %v425
    %429 = vrot.lane.b32.xlu0 %v427, 64
    %v430 = vpop.permute.xlu0 %429
    %v432 = vadd.f32 %v376, %v430
    %v433 = vtanh.pop %v432
    %v434 = vsub.f32 1.0, %v421
    %436 = vrot.lane.b32.xlu0 %v433, 96
    %v437 = vpop.permute.xlu0 %436
    %v439 = vmul.f32 %v434, %v437
    %v440 = vmul.f32 %v421, %v374
    %v441 = vadd.f32 %v439, %v440
    %s442 = scalar_lea.vmem %s0, 12
    %v443 = vld [vmem:[%s442] sm:$0x3]
    %445 = vrot.lane.b32.xlu0 %v441, 96
    %v446 = vpop.permute.xlu0 %445
    %v447 = vsel %vm35, %v446, 0
    %449 = vmatpush.msra.mxu0 0.0
    %450 = vmatpush.msra.mxu0 0.0
    %451 = vmatpush.msra.mxu0 0.0
    %452 = vmatpush.msra.mxu0 0.0
    %453 = vmatpush.msra.mxu0 0.0
    %454 = vmatpush.msra.mxu0 0.0
    %455 = vmatpush.msra.mxu0 0.0
    %456 = vmatpush.msra.mxu0 0.0
    %457 = vmatpush.msra.mxu0 0.0
    %458 = vmatpush.msra.mxu0 0.0
    %459 = vmatpush.msra.mxu0 0.0
    %460 = vmatpush.msra.mxu0 0.0
    %461 = vmatpush.msra.mxu0 %v31
    %462 = vmatpush.msra.mxu0 %v30
    %463 = vmatpush.msra.mxu0 %v29
    %464 = vmatpush.msra.mxu0 %v28
    %465 = vmatmul.f32.gmra.mxu0 %v447
    %v466 = vpop.f32.mrf.mxu0
    %v467 = vadd.f32 0.0, %v466
    %468 = vdwg.mxu0
    %v469 = vadd.f32 %v443, %v467
    %v470 = vxor.u32 %v469, 2147483648
    %v471 = vmul.f32 %v470, 1.442695
    %v472 = vpow.pop %v471
    %v473 = vadd.f32 %v472, 1.0
    %v474 = vrcp.pop %v473
    %v475 = vmul.f32 %v473, %v474
    %v476 = vsub.f32 1.0, %v475
    %v477 = vmul.f32 %v474, %v476
    %v478 = vadd.f32 %v474, %v477
    %vm479 = vweird.f32 %v473
    %vm480 = vweird.f32 %v474
    %vm481 = vmor %vm479, %vm480
    %v482 = vsel %vm481, %v474, %v478
    %v483 = vand.u32 2147483647, %v473
    %vm484 = vcmp.eq.f32.partialorder %v483, 8.507059e+37
    %v485 = vand.u32 %v473, 2147483648
    %v486 = vor.u32 1.1754944e-38, %v485
    %v487 = vsel %vm484, %v486, %v482
    %v488 = vmul.f32 1.0, %v487
    %v489 = vadd.f32 %v467, %v82
    %491 = vrot.lane.b32.xlu0 %v489, 64
    %v492 = vpop.permute.xlu0 %491
    %v494 = vmul.f32 %v488, %v492
    %496 = vrot.lane.b32.xlu0 %v494, 64
    %v497 = vpop.permute.xlu0 %496
    %v499 = vadd.f32 %v443, %v497
    %v500 = vtanh.pop %v499
    %v501 = vsub.f32 1.0, %v488
    %503 = vrot.lane.b32.xlu0 %v500, 96
    %v504 = vpop.permute.xlu0 %503
    %v506 = vmul.f32 %v501, %v504
    %v507 = vmul.f32 %v488, %v441
    %v508 = vadd.f32 %v506, %v507
    %s509 = scalar_lea.vmem %s0, 14
    %v510 = vld [vmem:[%s509] sm:$0x3]
    %512 = vrot.lane.b32.xlu0 %v508, 96
    %v513 = vpop.permute.xlu0 %512
    %v514 = vsel %vm35, %v513, 0
    %516 = vmatpush.msra.mxu0 0.0
    %517 = vmatpush.msra.mxu0 0.0
    %518 = vmatpush.msra.mxu0 0.0
    %519 = vmatpush.msra.mxu0 0.0
    %520 = vmatpush.msra.mxu0 0.0
    %521 = vmatpush.msra.mxu0 0.0
    %522 = vmatpush.msra.mxu0 0.0
    %523 = vmatpush.msra.mxu0 0.0
    %524 = vmatpush.msra.mxu0 0.0
    %525 = vmatpush.msra.mxu0 0.0
    %526 = vmatpush.msra.mxu0 0.0
    %527 = vmatpush.msra.mxu0 0.0
    %528 = vmatpush.msra.mxu0 %v31
    %529 = vmatpush.msra.mxu0 %v30
    %530 = vmatpush.msra.mxu0 %v29
    %531 = vmatpush.msra.mxu0 %v28
    %532 = vmatmul.f32.gmra.mxu0 %v514
    %v533 = vpop.f32.mrf.mxu0
    %v534 = vadd.f32 0.0, %v533
    %535 = vdwg.mxu0
    %v536 = vadd.f32 %v510, %v534
    %v537 = vxor.u32 %v536, 2147483648
    %v538 = vmul.f32 %v537, 1.442695
    %v539 = vpow.pop %v538
    %v540 = vadd.f32 %v539, 1.0
    %v541 = vrcp.pop %v540
    %v542 = vmul.f32 %v540, %v541
    %v543 = vsub.f32 1.0, %v542
    %v544 = vmul.f32 %v541, %v543
    %v545 = vadd.f32 %v541, %v544
    %vm546 = vweird.f32 %v540
    %vm547 = vweird.f32 %v541
    %vm548 = vmor %vm546, %vm547
    %v549 = vsel %vm548, %v541, %v545
    %v550 = vand.u32 2147483647, %v540
    %vm551 = vcmp.eq.f32.partialorder %v550, 8.507059e+37
    %v552 = vand.u32 %v540, 2147483648
    %v553 = vor.u32 1.1754944e-38, %v552
    %v554 = vsel %vm551, %v553, %v549
    %v555 = vmul.f32 1.0, %v554
    %v556 = vadd.f32 %v534, %v82
    %558 = vrot.lane.b32.xlu0 %v556, 64
    %v559 = vpop.permute.xlu0 %558
    %v561 = vmul.f32 %v555, %v559
    %563 = vrot.lane.b32.xlu0 %v561, 64
    %v564 = vpop.permute.xlu0 %563
    %v566 = vadd.f32 %v510, %v564
    %v567 = vtanh.pop %v566
    %v568 = vsub.f32 1.0, %v555
    %570 = vrot.lane.b32.xlu0 %v567, 96
    %v571 = vpop.permute.xlu0 %570
    %v573 = vmul.f32 %v568, %v571
    %v574 = vmul.f32 %v555, %v508
    %v575 = vadd.f32 %v573, %v574
    %v576 = vrot.slane %v106, 1
    %v578 = vrot.slane %v173, 1
    %v579 = vrot.slane %v240, 1
    %v580 = vrot.slane %v307, 1
    %v581 = vrot.slane %v374, 1
    %v582 = vrot.slane %v441, 1
    %v583 = vrot.slane %v508, 1
    %v585 = vrot.slane %v575, 1
    %v586 = vperm.slane %v173, 0
    %v587 = vperm.slane %v578, 0
    %v590 = vperm.slane %v240, 0
    %v591 = vperm.slane %v579, 0
    %v594 = vperm.slane %v307, 0
    %v595 = vperm.slane %v580, 0
    %v598 = vperm.slane %v374, 0
    %v599 = vperm.slane %v581, 0
    %v602 = vperm.slane %v441, 0
    %v603 = vperm.slane %v582, 0
    %v606 = vperm.slane %v508, 0
    %v607 = vperm.slane %v583, 0
    %v610 = vperm.slane %v575, 0
    %v611 = vperm.slane %v585, 0
    %vm614 = vcmask 1040384
    %v615 = vsel %vm614, %v106, %v586
    %v616 = vsel %vm614, %v576, %v587
    %vm617 = vcmask 1041408
    %v618 = vsel %vm617, %v615, %v590
    %v619 = vsel %vm617, %v616, %v591
    %vm620 = vcmask 1042432
    %v621 = vsel %vm620, %v618, %v594
    %v622 = vsel %vm620, %v619, %v595
    %vm623 = vcmask 1043456
    %v624 = vsel %vm623, %v621, %v598
    %v625 = vsel %vm623, %v622, %v599
    %vm626 = vcmask 1044480
    %v627 = vsel %vm626, %v624, %v602
    %v628 = vsel %vm626, %v625, %v603
    %vm629 = vcmask 1045504
    %v630 = vsel %vm629, %v627, %v606
    %v631 = vsel %vm629, %v628, %v607
    %vm632 = vcmask 1046528
    %v633 = vsel %vm632, %v630, %v610
    %v634 = vsel %vm632, %v631, %v611
    %637 = vrot.lane.b32.xlu0 %v633, 96
    %v638 = vpop.permute.xlu0 %637
    %639 = vrot.lane.b32.xlu0 %v634, 96
    %v640 = vpop.permute.xlu0 %639
    %643 = vst.msk [vmem:[#allocation3] sm:$0xff] %vm35, %v638
    %644 = vst.msk [vmem:[#allocation3 + $0x8] sm:$0xff] %vm35, %v640
    %645 = vrot.lane.b32.xlu0 %v575, 96
    %v646 = vpop.permute.xlu0 %645
    %vm648 = vcmask 254976
    %649 = vst.msk [vmem:[#allocation2] sm:$0x3] %vm648, %v646
    // Predicated region
    $region22: #{_lambda_.1} parent=1 // pred_check
      %p650 = pneg %p21
    $region23: #{_lambda_.1} parent=1 // pred_check_branch
      %652 = sbr.rel (%p650) target = $region25
    $region24: #{_lambda_.1} parent=1 // pred_region
      %653 = vst.msk [vmem:[#allocation5] sm:$0x3] %vm648, %v646
    $region25: #{_lambda_.1} parent=1 // pred_fallthru
      _
    // Predicated region
    $region26: #{_lambda_.1} parent=1 // pred_check
      _
    $region27: #{_lambda_.1} parent=1 // pred_check_branch
      %655 = sbr.rel (0) target = $region29
    $region28: #{_lambda_.1} parent=1 // pred_region
      %657 = vsyncadd [#allocation4], 0
      %s658 = sshll.u32 [#allocation3], 4
      %s659 = int_to_ptr.vmem [resolvable:$true] %s658
      %s660 = sshll.u32 %s4, 4
      %s661 = int_to_ptr.hbm [resolvable:$true] %s660
      %666 = dma.vmem_to_hbm [thread:$0]  %s659, 256, %s661, [#allocation4], 128, 128, 8
    $region29: #{_lambda_.1} parent=1 // pred_fallthru
      _
    // Predicated region
    $region30: #{_lambda_.1} parent=1 // pred_check
      _
    $region31: #{_lambda_.1} parent=1 // pred_check_branch
      %668 = sbr.rel (0) target = $region33
    $region32: #{_lambda_.1} parent=1 // pred_region
      %670 = vsyncadd [#allocation6], 0
      %s672 = sshll.u32 [#allocation5], 4
      %s673 = int_to_ptr.vmem [resolvable:$true] %s672
      %s674 = sshll.u32 %s5, 4
      %s675 = int_to_ptr.hbm [resolvable:$true] %s674
      %677 = dma.vmem_to_hbm [thread:$0]  %s673, 32, %s675, [#allocation6]
    $region33: #{_lambda_.1} parent=1 // pred_fallthru
      _
    // Predicated region
    $region34: #{_lambda_.1} parent=1 // pred_check
      _
    $region35: #{_lambda_.1} parent=1 // pred_check_branch
      %679 = sbr.rel (0) target = $region37
    $region36: #{_lambda_.1} parent=1 // pred_region
      %681 = dma.done [#allocation4], 256
    $region37: #{_lambda_.1} parent=1 // pred_fallthru
      _
    // Predicated region
    $region38: #{_lambda_.1} parent=1 // pred_check
      _
    $region39: #{_lambda_.1} parent=1 // pred_check_branch
      %683 = sbr.rel (0) target = $region41
    $region40: #{_lambda_.1} parent=1 // pred_region
      %685 = dma.done [#allocation6], 32
    $region41: #{_lambda_.1} parent=1 // pred_fallthru
      _
    %686 = vsyncpa [#allocation4], 1
    %687 = vsyncpa [#allocation6], 1

</llo_original>
